<compile_context>
chip_gen: v7x
topology: tpu7x:2x2x1
jax: 0.10.0
libtpu: 0.0.40
codegen_flags: <defaults>
</compile_context>

<pallas_src>
import functools

import jax
import jax.numpy as jnp
from jax import lax
from jax.experimental import pallas as pl
from jax.experimental.pallas import tpu as pltpu


_NEG_INF = -1e30  # finite "minus infinity": avoids inf-inf NaNs on padded cols


def _ce_loss_kernel(logits_ref, labels_ref, out_ref, m_ref, l_ref, lab_ref, *,
                    num_classes, block_c, mask_last):
    # logits_ref: (bB, bC) native dtype; labels_ref: (bB, 1) int32
    # out_ref:    (bB, 1) f32 per-sample loss (resident across the class axis)
    # scratch:    m_ref / l_ref / lab_ref : (bB, 1) f32 running max / sumexp /
    #             gathered label logit.
    j = pl.program_id(1)
    nc = pl.num_programs(1)

    @pl.when(j == 0)
    def _init():
        m_ref[...] = jnp.full(m_ref.shape, _NEG_INF, dtype=jnp.float32)
        l_ref[...] = jnp.zeros(l_ref.shape, dtype=jnp.float32)
        lab_ref[...] = jnp.zeros(lab_ref.shape, dtype=jnp.float32)

    chunk = logits_ref[...].astype(jnp.float32)         # promote once, in VMEM

    # Local (unshifted) column iota: no full-width `+ j*block_c` add; instead
    # the label / valid-column thresholds are shifted into chunk coordinates.
    local_ids = jax.lax.broadcasted_iota(jnp.int32, chunk.shape, 1)

    if mask_last:
        # Pay the ragged class-padding mask only on the final chunk.
        chunk = lax.cond(
            j == nc - 1,
            lambda c: jnp.where(local_ids < (num_classes - j * block_c),
                                c, _NEG_INF),
            lambda c: c,
            chunk)

    # Online logsumexp update.
    m_prev = m_ref[...]
    m_new = jnp.maximum(m_prev, jnp.max(chunk, axis=-1, keepdims=True))
    alpha = jnp.exp(m_prev - m_new)
    l_ref[...] = alpha * l_ref[...] + jnp.sum(jnp.exp(chunk - m_new),
                                              axis=-1, keepdims=True)
    m_ref[...] = m_new

    # Label-logit gather: compare the local iota against the label shifted into
    # this chunk's coordinates ((bB,1) int work, essentially free). A select
    # (not a one-hot multiply), so masked columns never produce NaN.
    lab_shift = labels_ref[...] - j * block_c
    lab_ref[...] += jnp.sum(jnp.where(local_ids == lab_shift, chunk, 0.0),
                            axis=-1, keepdims=True)

    @pl.when(j == nc - 1)
    def _finalize():
        lse = m_ref[...] + jnp.log(l_ref[...])
        out_ref[...] = lse - lab_ref[...]


def _round_up(x, m):
    return ((x + m - 1) // m) * m


def _tpu_config():
    """(scoped VMEM budget bytes, TensorCores per chip) for the local TPU."""
    try:
        kind = jax.devices()[0].device_kind.lower()
    except Exception:
        kind = ""
    if "v7" in kind or "7x" in kind:
        # v7x: 64 MiB physical VMEM per TC, 2 TCs per chip -> stay <= ~48 MiB.
        return 44 * 1024 * 1024, 2
    if any(g in kind for g in ("v4", "v5", "v6")):
        # 128 MiB physical VMEM, single TC: don't leave 3/4 of it idle.
        return 80 * 1024 * 1024, 1
    # Unknown generation / emulator: conservative defaults.
    return 32 * 1024 * 1024, 1


def _choose_blocks(batch, num_classes, itemsize, vmem_budget, cores):
    # Per-element VMEM cost: 2x double-buffered native-dtype input plus ~5
    # full-block f32 temporaries Mosaic materializes (astype, iota, exp,
    # selects).  Keep 25% headroom against the scoped limit.
    bytes_per_elem = 2 * itemsize + 5 * 4
    max_elems = max(8 * 128, (vmem_budget * 3 // 4) // bytes_per_elem)

    b_full = _round_up(max(batch, 1), 8)
    block_b = min(b_full, 512)
    # Megacore (v7x): guarantee >= `cores` batch blocks whenever the batch
    # allows it so the "parallel" axis shards across both TensorCores.
    if cores > 1 and b_full >= cores * 8:
        block_b = min(block_b, _round_up(-(-b_full // cores), 8))

    if num_classes * block_b <= max_elems:
        # Single class chunk covering the full class dim: no ragged mask at all.
        block_c = num_classes
    else:
        c_pad = _round_up(num_classes, 128)
        block_c = max(128, min(8192, c_pad, (max_elems // block_b) // 128 * 128))
        while block_b * block_c > max_elems and block_b > 8:
            block_b = max(8, (block_b // 2) // 8 * 8)
    return block_b, block_c


def ce_loss_pallas(logits, labels, *, block_b=None, block_c=None):
    """Cross-entropy loss (mean over batch).

    logits: (B, C) float (f32 or bf16 — kept in native dtype in HBM),
    labels: (B,) integer class indices.
    """
    B, C = logits.shape
    itemsize = jnp.dtype(logits.dtype).itemsize
    vmem_budget, cores = _tpu_config()
    auto_b, auto_c = _choose_blocks(B, C, itemsize, vmem_budget, cores)
    block_b = auto_b if block_b is None else block_b
    block_c = auto_c if block_c is None else block_c

    labels2d = labels.astype(jnp.int32).reshape(B, 1)
    nb = pl.cdiv(B, block_b)
    nc = pl.cdiv(C, block_c)
    mask_last = (C % block_c) != 0   # static: skip masking when chunks divide C

    kernel = functools.partial(_ce_loss_kernel, num_classes=C, block_c=block_c,
                               mask_last=mask_last)

    cost = pl.CostEstimate(
        flops=5 * B * C,
        transcendentals=B * C,
        bytes_accessed=B * C * itemsize + B * 4 + B * 4,
    )

    per_sample = pl.pallas_call(
        kernel,
        out_shape=jax.ShapeDtypeStruct((B, 1), jnp.float32),
        grid_spec=pltpu.PrefetchScalarGridSpec(
            num_scalar_prefetch=0,
            grid=(nb, nc),
            in_specs=[
                pl.BlockSpec((block_b, block_c), lambda i, j: (i, j)),
                pl.BlockSpec((block_b, 1), lambda i, j: (i, 0)),
            ],
            out_specs=pl.BlockSpec((block_b, 1), lambda i, j: (i, 0)),
            scratch_shapes=[
                pltpu.VMEM((block_b, 1), jnp.float32),  # running max m
                pltpu.VMEM((block_b, 1), jnp.float32),  # running sumexp l
                pltpu.VMEM((block_b, 1), jnp.float32),  # gathered label logit
            ],
        ),
        compiler_params=pltpu.CompilerParams(
            dimension_semantics=("parallel", "arbitrary"),
            vmem_limit_bytes=int(vmem_budget),
        ),
        cost_estimate=cost,
    )(logits, labels2d)

    # Tiny final reduction in plain JAX (keeps the batch axis parallel and
    # avoids a cross-core shared accumulator).
    return jnp.mean(per_sample)


def ce_loss_ref(logits, labels):
    logits = logits.astype(jnp.float32)
    lse = jax.nn.logsumexp(logits, axis=-1)
    label_logit = jnp.take_along_axis(
        logits, labels[:, None].astype(jnp.int32), axis=-1)[:, 0]
    return jnp.mean(lse - label_logit)


if __name__ == "__main__":
    key = jax.random.PRNGKey(0)
    k1, k2, k3, k4 = jax.random.split(key, 4)

    # 1) Small shape: single class chunk (block_c == C, no mask, nc == 1).
    B1, C1 = 8, 32
    logits1 = jax.random.normal(k1, (B1, C1), dtype=jnp.float32)
    labels1 = jax.random.randint(k2, (B1,), 0, C1, dtype=jnp.int32)
    loss1 = ce_loss_pallas(logits1, labels1)
    jax.block_until_ready(loss1)
    ref1 = ce_loss_ref(logits1, labels1)
    assert jnp.allclose(loss1, ref1, rtol=1e-5, atol=1e-5), (loss1, ref1)

    # 2) bf16 logits kept bf16 in HBM, f32 math inside the kernel.
    logits1_bf16 = logits1.astype(jnp.bfloat16)
    loss_bf16 = ce_loss_pallas(logits1_bf16, labels1)
    jax.block_until_ready(loss_bf16)
    ref_bf16 = ce_loss_ref(logits1_bf16, labels1)
    assert jnp.allclose(loss_bf16, ref_bf16, rtol=1e-5, atol=1e-5), (
        loss_bf16, ref_bf16)

    # 3) Ragged tiling path: online logsumexp across 2 class chunks, last-chunk
    #    masking (lax.cond), ragged batch blocks (B=20, block_b=8).
    B2, C2 = 20, 200
    logits2 = jax.random.normal(k3, (B2, C2), dtype=jnp.float32)
    labels2 = jax.random.randint(k4, (B2,), 0, C2, dtype=jnp.int32)
    loss2 = ce_loss_pallas(logits2, labels2, block_b=8, block_c=128)
    jax.block_until_ready(loss2)
    ref2 = ce_loss_ref(logits2, labels2)
    assert jnp.allclose(loss2, ref2, rtol=1e-5, atol=1e-5), (loss2, ref2)

    print("KERNEL_OK")
</pallas_src>

<mosaic_0001>
module attributes {stable_mosaic.version = 11 : i64} {
  func.func @_ce_loss_kernel(%arg0: i32, %arg1: i32, %arg2: memref<8x32xf32, #tpu.memory_space<vmem>>, %arg3: memref<8x1xi32, #tpu.memory_space<vmem>>, %arg4: memref<8x1xf32, #tpu.memory_space<vmem>>, %arg5: memref<8x1xf32, #tpu.memory_space<vmem>>, %arg6: memref<8x1xf32, #tpu.memory_space<vmem>>, %arg7: memref<8x1xf32, #tpu.memory_space<vmem>>) attributes {dimension_semantics = [#tpu.dimension_semantics<parallel>, #tpu.dimension_semantics<arbitrary>], iteration_bounds = array<i64: 1, 1>, scalar_prefetch = 0 : i64, scratch_operands = 3 : i64, tpu.core_type = #tpu.core_type<tc>, window_params = [{transform_indices = @transform_0, window_bounds = array<i64: 8, 32>}, {transform_indices = @transform_1, window_bounds = array<i64: 8, 1>}, {transform_indices = @transform_2, window_bounds = array<i64: 8, 1>}]} {
    %c0_i32 = arith.constant 0 : i32
    %0 = arith.cmpi eq, %arg1, %c0_i32 : i32
    %1 = arith.extui %0 : i1 to i32
    %c0_i32_0 = arith.constant 0 : i32
    %2 = arith.cmpi ne, %1, %c0_i32_0 : i32
    scf.if %2 {
      %cst_21 = arith.constant -1.000000e+30 : f32
      %37 = vector.broadcast %cst_21 : f32 to vector<8x1xf32>
      %c0_22 = arith.constant 0 : index
      %c0_23 = arith.constant 0 : index
      %38 = vector.load %arg5[%c0_22, %c0_23] : memref<8x1xf32, #tpu.memory_space<vmem>>, vector<8x1xf32>
      tpu.vector_store %arg5[%c0_22, %c0_23], %37 {strides = array<i32>} : memref<8x1xf32, #tpu.memory_space<vmem>>, vector<8x1xf32>,
      %cst_24 = arith.constant 0.000000e+00 : f32
      %39 = vector.broadcast %cst_24 : f32 to vector<8x1xf32>
      %c0_25 = arith.constant 0 : index
      %c0_26 = arith.constant 0 : index
      %40 = vector.load %arg6[%c0_25, %c0_26] : memref<8x1xf32, #tpu.memory_space<vmem>>, vector<8x1xf32>
      tpu.vector_store %arg6[%c0_25, %c0_26], %39 {strides = array<i32>} : memref<8x1xf32, #tpu.memory_space<vmem>>, vector<8x1xf32>,
      %cst_27 = arith.constant 0.000000e+00 : f32
      %41 = vector.broadcast %cst_27 : f32 to vector<8x1xf32>
      %c0_28 = arith.constant 0 : index
      %c0_29 = arith.constant 0 : index
      %42 = vector.load %arg7[%c0_28, %c0_29] : memref<8x1xf32, #tpu.memory_space<vmem>>, vector<8x1xf32>
      tpu.vector_store %arg7[%c0_28, %c0_29], %41 {strides = array<i32>} : memref<8x1xf32, #tpu.memory_space<vmem>>, vector<8x1xf32>,
    } else {
    }
    %c0 = arith.constant 0 : index
    %c0_1 = arith.constant 0 : index
    %3 = vector.load %arg2[%c0, %c0_1] : memref<8x32xf32, #tpu.memory_space<vmem>>, vector<8x32xf32>
    %4 = tpu.iota {dimensions = array<i32: 1>} : vector<8x32xi32>
    %c0_2 = arith.constant 0 : index
    %c0_3 = arith.constant 0 : index
    %5 = vector.load %arg5[%c0_2, %c0_3] : memref<8x1xf32, #tpu.memory_space<vmem>>, vector<8x1xf32>
    %cst = arith.constant dense<0xFF800000> : vector<8xf32>
    %6 = vector.multi_reduction <maximumf>, %3, %cst [1] : vector<8x32xf32> to vector<8xf32>
    %7 = vector.shape_cast %6 : vector<8xf32> to vector<8x1xf32>
    %8 = arith.maximumf %5, %7 : vector<8x1xf32>
    %9 = arith.subf %5, %8 : vector<8x1xf32>
    %10 = math.exp %9 : vector<8x1xf32>
    %c0_4 = arith.constant 0 : index
    %c0_5 = arith.constant 0 : index
    %11 = vector.load %arg6[%c0_4, %c0_5] : memref<8x1xf32, #tpu.memory_space<vmem>>, vector<8x1xf32>
    %12 = arith.mulf %10, %11 : vector<8x1xf32>
    %13 = vector.broadcast %8 : vector<8x1xf32> to vector<8x32xf32>
    %14 = arith.subf %3, %13 : vector<8x32xf32>
    %15 = math.exp %14 : vector<8x32xf32>
    %cst_6 = arith.constant dense<0.000000e+00> : vector<8xf32>
    %16 = vector.multi_reduction <add>, %15, %cst_6 [1] : vector<8x32xf32> to vector<8xf32>
    %17 = vector.shape_cast %16 : vector<8xf32> to vector<8x1xf32>
    %18 = arith.addf %12, %17 : vector<8x1xf32>
    %c0_7 = arith.constant 0 : index
    %c0_8 = arith.constant 0 : index
    %19 = vector.load %arg6[%c0_7, %c0_8] : memref<8x1xf32, #tpu.memory_space<vmem>>, vector<8x1xf32>
    tpu.vector_store %arg6[%c0_7, %c0_8], %18 {strides = array<i32>} : memref<8x1xf32, #tpu.memory_space<vmem>>, vector<8x1xf32>,
    %c0_9 = arith.constant 0 : index
    %c0_10 = arith.constant 0 : index
    %20 = vector.load %arg5[%c0_9, %c0_10] : memref<8x1xf32, #tpu.memory_space<vmem>>, vector<8x1xf32>
    tpu.vector_store %arg5[%c0_9, %c0_10], %8 {strides = array<i32>} : memref<8x1xf32, #tpu.memory_space<vmem>>, vector<8x1xf32>,
    %c0_11 = arith.constant 0 : index
    %c0_12 = arith.constant 0 : index
    %21 = vector.load %arg3[%c0_11, %c0_12] : memref<8x1xi32, #tpu.memory_space<vmem>>, vector<8x1xi32>
    %c32_i32 = arith.constant 32 : i32
    %22 = arith.muli %arg1, %c32_i32 : i32
    %23 = vector.broadcast %22 : i32 to vector<8x1xi32>
    %24 = arith.subi %21, %23 : vector<8x1xi32>
    %c0_13 = arith.constant 0 : index
    %c0_14 = arith.constant 0 : index
    %25 = vector.load %arg7[%c0_13, %c0_14] : memref<8x1xf32, #tpu.memory_space<vmem>>, vector<8x1xf32>
    %26 = vector.broadcast %24 : vector<8x1xi32> to vector<8x32xi32>
    %27 = arith.cmpi eq, %4, %26 : vector<8x32xi32>
    %cst_15 = arith.constant 0.000000e+00 : f32
    %28 = vector.broadcast %cst_15 : f32 to vector<8x32xf32>
    %29 = arith.select %27, %3, %28 : vector<8x32xi1>, vector<8x32xf32>
    %cst_16 = arith.constant dense<0.000000e+00> : vector<8xf32>
    %30 = vector.multi_reduction <add>, %29, %cst_16 [1] : vector<8x32xf32> to vector<8xf32>
    %31 = vector.shape_cast %30 : vector<8xf32> to vector<8x1xf32>
    %32 = arith.addf %25, %31 : vector<8x1xf32>
    %c0_17 = arith.constant 0 : index
    %c0_18 = arith.constant 0 : index
    %33 = vector.load %arg7[%c0_17, %c0_18] : memref<8x1xf32, #tpu.memory_space<vmem>>, vector<8x1xf32>
    tpu.vector_store %arg7[%c0_17, %c0_18], %32 {strides = array<i32>} : memref<8x1xf32, #tpu.memory_space<vmem>>, vector<8x1xf32>,
    %c0_i32_19 = arith.constant 0 : i32
    %34 = arith.cmpi eq, %arg1, %c0_i32_19 : i32
    %35 = arith.extui %34 : i1 to i32
    %c0_i32_20 = arith.constant 0 : i32
    %36 = arith.cmpi ne, %35, %c0_i32_20 : i32
    scf.if %36 {
      %c0_21 = arith.constant 0 : index
      %c0_22 = arith.constant 0 : index
      %37 = vector.load %arg5[%c0_21, %c0_22] : memref<8x1xf32, #tpu.memory_space<vmem>>, vector<8x1xf32>
      %c0_23 = arith.constant 0 : index
      %c0_24 = arith.constant 0 : index
      %38 = vector.load %arg6[%c0_23, %c0_24] : memref<8x1xf32, #tpu.memory_space<vmem>>, vector<8x1xf32>
      %39 = math.log %38 : vector<8x1xf32>
      %40 = arith.addf %37, %39 : vector<8x1xf32>
      %c0_25 = arith.constant 0 : index
      %c0_26 = arith.constant 0 : index
      %41 = vector.load %arg7[%c0_25, %c0_26] : memref<8x1xf32, #tpu.memory_space<vmem>>, vector<8x1xf32>
      %42 = arith.subf %40, %41 : vector<8x1xf32>
      %c0_27 = arith.constant 0 : index
      %c0_28 = arith.constant 0 : index
      %43 = vector.load %arg4[%c0_27, %c0_28] : memref<8x1xf32, #tpu.memory_space<vmem>>, vector<8x1xf32>
      tpu.vector_store %arg4[%c0_27, %c0_28], %42 {strides = array<i32>} : memref<8x1xf32, #tpu.memory_space<vmem>>, vector<8x1xf32>,
    } else {
    }
    return
  }
  func.func @transform_0(%arg0: i32, %arg1: i32) -> (i32, i32) {
    %c0_i32 = arith.constant 0 : i32
    return %arg0, %arg1 : i32, i32
  }
  func.func @transform_1(%arg0: i32, %arg1: i32) -> (i32, i32) {
    %c0_i32 = arith.constant 0 : i32
    %c0_i32_0 = arith.constant 0 : i32
    return %arg0, %c0_i32 : i32, i32
  }
  func.func @transform_2(%arg0: i32, %arg1: i32) -> (i32, i32) {
    %c0_i32 = arith.constant 0 : i32
    %c0_i32_0 = arith.constant 0 : i32
    return %arg0, %c0_i32 : i32, i32
  }
}

</mosaic_0001>

<llo_original>
// kernel: tpu_custom_call.1
$region0: #{tpu_custom_call.1}
  #allocation0 [shape = 'u32[]', space=smem, size = 0x4, offset = 0x4, fixed_abs, tag = 'smem constant byte address 0x4 - core index']
  #allocation1 [shape = 'u32[144,128]{1,0:T(1,128)}', space=vmem, size = 0x12000, scoped, tag = 'internal scratch']
  #allocation2 [shape = 'f32[8,1]{1,0:T(8,128)}', space=vmem, size = 0x1000, scoped, tag = 'scratch operand']
  #allocation3 [shape = 'f32[8,1]{1,0:T(8,128)}', space=vmem, size = 0x1000, scoped, tag = 'scratch operand']
  #allocation4 [shape = 'f32[8,1]{1,0:T(8,128)}', space=vmem, size = 0x1000, scoped, tag = 'scratch operand']
  %s0 = inlined_call_operand.vmem [shape: f32[8,32], index: 0, kind: input, shape index: {}]
  %s1 = inlined_call_operand.vmem [shape: s32[8,1], index: 1, kind: input, shape index: {}]
  %s2 = inlined_call_operand.vmem [shape: f32[8,1], index: 2, kind: output, shape index: {}]
  %s3 = sld [smem:[#allocation0]]
  $region26: #{tpu_custom_call.1} parent=0
    _
  %s5 = ssub.s32 1, %s3
  %s6 = scalar_select 0, %s5, %s3
  // Predicated region
  $region2: #{tpu_custom_call.1} parent=0 // pred_check
    _
  $region3: #{tpu_custom_call.1} parent=0 // pred_check_branch
    %8 = sbr.rel (0) target = $region5
  $region4: #{tpu_custom_call.1} parent=0 // pred_region
    _
  $region5: #{tpu_custom_call.1} parent=0 // pred_fallthru
    _
  // Predicated region
  $region6: #{tpu_custom_call.1} parent=0 // pred_check
    _
  $region7: #{tpu_custom_call.1} parent=0 // pred_check_branch
    %10 = sbr.rel (0) target = $region9
  $region8: #{tpu_custom_call.1} parent=0 // pred_region
    _
  $region9: #{tpu_custom_call.1} parent=0 // pred_fallthru
    _
  %p11 = scmp.eq.s32.totalorder 0, 0
  // Predicated region
  $region10: #{tpu_custom_call.1} parent=0 // pred_check
    %p12 = pneg %p11
  $region11: #{tpu_custom_call.1} parent=0 // pred_check_branch
    %14 = sbr.rel (%p12) target = $region13
  $region12: #{tpu_custom_call.1} parent=0 // pred_region
    %vm15 = vcmask 7168
    %16 = vst.msk [vmem:[#allocation2] sm:$0xff] %vm15, -1e+30
    %17 = vst.msk [vmem:[#allocation3] sm:$0xff] %vm15, 0.0
    %18 = vst.msk [vmem:[#allocation4] sm:$0xff] %vm15, 0.0
  $region13: #{tpu_custom_call.1} parent=0 // pred_fallthru
    _
  %v19 = vld [vmem:[%s0] sm:$0xff]
  %v20 = vlaneseq
  %v21 = vand.u32 %v20, 127
  %v22 = vld [vmem:[#allocation2] sm:$0xff]
  %vm23 = vcmask 261120
  %v24 = vsel %vm23, %v19, -inf
  %25 = vmax.xlane.f32.xlu0 %v24
  %v26 = vpop.xlane.xlu0 %25
  %v27 = vmax.f32 %v22, %v26
  %v28 = vsub.f32 %v22, %v27
  %v29 = vmul.f32 %v28, 1.442695
  %v30 = vpow.pop %v29
  %v31 = vld [vmem:[#allocation3] sm:$0xff]
  %v32 = vmul.f32 %v30, %v31
  %34 = vset.pattern.permute.xlu0 0
  %35 = vperm.xlu0 %34, %v27
  %v36 = vpop.permute.xlu0 %35
  %v38 = vsub.f32 %v19, %v36
  %v39 = vmul.f32 %v38, 1.442695
  %v40 = vpow.pop %v39
  %v41 = vsel %vm23, %v40, 0.0
  %42 = vadd.xlane.f32.xlu0 %v41
  %v43 = vpop.xlane.xlu0 %42
  %v44 = vadd.f32 %v32, %v43
  %vm45 = vcmask 7168
  %46 = vst.msk [vmem:[#allocation3] sm:$0xff] %vm45, %v44
  %47 = vst.msk [vmem:[#allocation2] sm:$0xff] %vm45, %v27
  %v48 = vld [vmem:[%s1] sm:$0xff]
  %s49 = smul.u32 0, 32
  %v50 = vstv %s49
  %v51 = vsub.s32 %v48, %v50
  %v52 = vld [vmem:[#allocation4] sm:$0xff]
  %53 = vset.pattern.permute.xlu0 0
  %54 = vperm.xlu0 %53, %v51
  %v55 = vpop.permute.xlu0 %54
  %vm56 = vcmp.eq.s32.totalorder %v21, %v55
  %v57 = vsel %vm56, %v19, 0.0
  %v58 = vsel %vm23, %v57, 0.0
  %59 = vadd.xlane.f32.xlu0 %v58
  %v60 = vpop.xlane.xlu0 %59
  %v61 = vadd.f32 %v52, %v60
  %62 = vst.msk [vmem:[#allocation4] sm:$0xff] %vm45, %v61
  // Predicated region
  $region14: #{tpu_custom_call.1} parent=0 // pred_check
    %p63 = pneg %p11
  $region15: #{tpu_custom_call.1} parent=0 // pred_check_branch
    %65 = sbr.rel (%p63) target = $region17
  $region16: #{tpu_custom_call.1} parent=0 // pred_region
    %v66 = vld [vmem:[#allocation2] sm:$0xff]
    %v67 = vld [vmem:[#allocation3] sm:$0xff]
    %v68 = vlog2.pop %v67
    %v69 = vmul.f32 %v68, 0.6931472
    %v70 = vadd.f32 %v66, %v69
    %v71 = vld [vmem:[#allocation4] sm:$0xff]
    %v72 = vsub.f32 %v70, %v71
    %73 = vst.msk [vmem:[%s2] sm:$0xff] %vm45, %v72
  $region17: #{tpu_custom_call.1} parent=0 // pred_fallthru
    _
  // Predicated region
  $region18: #{tpu_custom_call.1} parent=0 // pred_check
    _
  $region19: #{tpu_custom_call.1} parent=0 // pred_check_branch
    %75 = sbr.rel (0) target = $region21
  $region20: #{tpu_custom_call.1} parent=0 // pred_region
    _
  $region21: #{tpu_custom_call.1} parent=0 // pred_fallthru
    _
  // Predicated region
  $region22: #{tpu_custom_call.1} parent=0 // pred_check
    _
  $region23: #{tpu_custom_call.1} parent=0 // pred_check_branch
    %77 = sbr.rel (0) target = $region25
  $region24: #{tpu_custom_call.1} parent=0 // pred_region
    _
  $region25: #{tpu_custom_call.1} parent=0 // pred_fallthru
    _

</llo_original>
